<compile_context>
chip_gen: v5e
topology: v5e:2x2
jax: 0.10.0
libtpu: 0.0.40
codegen_flags: <defaults>
</compile_context>

<pallas_src>
import functools
import math

import jax
import jax.numpy as jnp
from jax.experimental import pallas as pl
from jax.experimental.pallas import tpu as pltpu


def _round_up(x, m):
    return ((x + m - 1) // m) * m


def _dqn_kernel(*refs, num_hidden_layers):
    # refs = (x, w1, b1, [wh, bh,] wo, bo, out)
    if num_hidden_layers > 0:
        x_ref, w1_ref, b1_ref, wh_ref, bh_ref, wo_ref, bo_ref, o_ref = refs
    else:
        x_ref, w1_ref, b1_ref, wo_ref, bo_ref, o_ref = refs
        wh_ref = bh_ref = None

    # fc1 + ReLU  (bf16 MXU operands, f32 accumulate, f32 epilogue).
    # x arrives f32 from HBM; the cast to bf16 is free VPU work in-kernel.
    x = x_ref[...].astype(jnp.bfloat16)
    h = jnp.dot(x, w1_ref[...], preferred_element_type=jnp.float32) + b1_ref[...]
    h = jnp.maximum(h, 0.0)

    # hidden layers + ReLU (statically unrolled; wh/bh stacked on leading axis)
    for l in range(num_hidden_layers):
        h = jnp.dot(h.astype(jnp.bfloat16), wh_ref[l],
                    preferred_element_type=jnp.float32) + bh_ref[l]
        h = jnp.maximum(h, 0.0)

    # output layer (no activation); narrow (TB, A) f32 store (masked vst is far
    # cheaper than the 128-lane padded writeback it replaces).
    o_ref[...] = (jnp.dot(h.astype(jnp.bfloat16), wo_ref[...],
                          preferred_element_type=jnp.float32)
                  + bo_ref[...]).astype(o_ref.dtype)


def dqn_forward(states, params, *, max_batch_tile=4096):
    """Q(s, .) forward pass.

    states: (*, S) float32
    params: dict with w1 (S,H), b1 (1,H), wh (L,H,H), bh (L,1,H),
            wo (H,A), bo (1,A)   (all float32, PyTorch-equivalent math x@W+b)
    returns: (*, A) float32
    """
    w1, b1 = params["w1"], params["b1"]
    wh, bh = params["wh"], params["bh"]
    wo, bo = params["wo"], params["bo"]

    S, H = w1.shape
    A = wo.shape[1]
    L = wh.shape[0]

    lead_shape = states.shape[:-1]
    x2d = states.reshape(-1, S).astype(jnp.float32)
    B = x2d.shape[0]

    # ---- batch tiling: TB multiple of 8, capped; >=2 grid steps for big B so
    #      both TensorCores are used on v7x (no effect on single-TC v5e/v6e) ---
    B8 = _round_up(max(B, 1), 8)
    if B8 >= 512:
        TB = min(max_batch_tile, _round_up(pl.cdiv(B8, 2), 8))
    else:
        TB = min(max_batch_tile, B8)
    B_pad = _round_up(B8, TB)
    grid = (B_pad // TB,)

    # Only batch-dim zero-pad (rare, small); no feature pad / cast in wrapper.
    if B_pad != B:
        x2d = jnp.pad(x2d, ((0, B_pad - B), (0, 0)))

    # Weights cast once to bf16 (tiny, one-off).
    w1_p = w1.astype(jnp.bfloat16)          # (S, H)
    wh_p = wh.astype(jnp.bfloat16)          # (L, H, H)
    wo_p = wo.astype(jnp.bfloat16)          # (H, A)
    b1_p = b1.astype(jnp.float32)           # (1, H)
    bh_p = bh.astype(jnp.float32)           # (L, 1, H)
    bo_p = bo.astype(jnp.float32)           # (1, A)

    kernel = functools.partial(_dqn_kernel, num_hidden_layers=L)

    # Weights/biases: constant block index -> resident in VMEM across the grid.
    in_specs = [pl.BlockSpec((TB, S), lambda i: (i, 0)),      # x tile (f32)
                pl.BlockSpec(w1_p.shape, lambda i: (0, 0)),
                pl.BlockSpec(b1_p.shape, lambda i: (0, 0))]
    operands = [x2d, w1_p, b1_p]
    if L > 0:  # omit zero-extent operands entirely when there are no hidden layers
        in_specs += [pl.BlockSpec(wh_p.shape, lambda i: (0, 0, 0)),
                     pl.BlockSpec(bh_p.shape, lambda i: (0, 0, 0))]
        operands += [wh_p, bh_p]
    in_specs += [pl.BlockSpec(wo_p.shape, lambda i: (0, 0)),
                 pl.BlockSpec(bo_p.shape, lambda i: (0, 0))]
    operands += [wo_p, bo_p]

    flops = 2 * B_pad * (S * H + L * H * H + H * A)
    weight_bytes = ((w1_p.size + wh_p.size + wo_p.size) * 2
                    + (b1_p.size + bh_p.size + bo_p.size) * 4)
    bytes_accessed = B_pad * S * 4 + B_pad * A * 4 + weight_bytes

    out = pl.pallas_call(
        kernel,
        out_shape=jax.ShapeDtypeStruct((B_pad, A), jnp.float32),
        grid=grid,
        in_specs=in_specs,
        out_specs=pl.BlockSpec((TB, A), lambda i: (i, 0)),
        compiler_params=pltpu.CompilerParams(
            dimension_semantics=("parallel",),          # megacore sharding on v7x
            vmem_limit_bytes=32 * 1024 * 1024),
        cost_estimate=pl.CostEstimate(flops=flops,
                                      transcendentals=0,
                                      bytes_accessed=bytes_accessed),
    )(*operands)

    return out[:B].reshape(*lead_shape, A)


def init_dqn_params(key, state_dim=5, action_dim=4, num_layers=3, hidden_dim=64):
    """Deterministic init mirroring nn.Linear's U(-1/sqrt(fan_in), 1/sqrt(fan_in))."""
    num_hidden = num_layers - 2
    keys = jax.random.split(key, 2 * (num_hidden + 2))

    def linear(kw, kb, fan_in, fan_out):
        bound = 1.0 / math.sqrt(fan_in)
        w = jax.random.uniform(kw, (fan_in, fan_out), jnp.float32, -bound, bound)
        b = jax.random.uniform(kb, (1, fan_out), jnp.float32, -bound, bound)
        return w, b

    w1, b1 = linear(keys[0], keys[1], state_dim, hidden_dim)

    wh_list, bh_list = [], []
    for l in range(num_hidden):
        w, b = linear(keys[2 + 2 * l], keys[3 + 2 * l], hidden_dim, hidden_dim)
        wh_list.append(w)
        bh_list.append(b)
    if num_hidden > 0:
        wh = jnp.stack(wh_list, axis=0)                     # (L, H, H)
        bh = jnp.stack(bh_list, axis=0)                     # (L, 1, H)
    else:
        wh = jnp.zeros((0, hidden_dim, hidden_dim), jnp.float32)
        bh = jnp.zeros((0, 1, hidden_dim), jnp.float32)

    wo, bo = linear(keys[-2], keys[-1], hidden_dim, action_dim)

    return {"w1": w1, "b1": b1, "wh": wh, "bh": bh, "wo": wo, "bo": bo}


def _ref_forward_bf16(x, p, state_dim, action_dim):
    """Pure-JAX reference mimicking the kernel's bf16-operand / f32-accum math."""
    xb = x.reshape(-1, state_dim).astype(jnp.bfloat16)
    h = jnp.dot(xb, p["w1"].astype(jnp.bfloat16),
                preferred_element_type=jnp.float32) + p["b1"]
    h = jnp.maximum(h, 0.0)
    for l in range(p["wh"].shape[0]):
        h = jnp.dot(h.astype(jnp.bfloat16), p["wh"][l].astype(jnp.bfloat16),
                    preferred_element_type=jnp.float32) + p["bh"][l]
        h = jnp.maximum(h, 0.0)
    o = jnp.dot(h.astype(jnp.bfloat16), p["wo"].astype(jnp.bfloat16),
                preferred_element_type=jnp.float32) + p["bo"]
    return o.reshape(*x.shape[:-1], action_dim)


def _ref_forward_f32(x, p, state_dim, action_dim):
    """Pure f32 PyTorch-equivalent math."""
    h = jnp.maximum(x.reshape(-1, state_dim) @ p["w1"] + p["b1"], 0.0)
    for l in range(p["wh"].shape[0]):
        h = jnp.maximum(h @ p["wh"][l] + p["bh"][l], 0.0)
    return (h @ p["wo"] + p["bo"]).reshape(*x.shape[:-1], action_dim)


if __name__ == "__main__":
    key = jax.random.PRNGKey(0)
    pkey, xkey, xkey2 = jax.random.split(key, 3)

    state_dim, action_dim, num_layers, hidden_dim = 5, 4, 3, 64
    params = init_dqn_params(pkey, state_dim, action_dim, num_layers, hidden_dim)

    # Small case: (*, S) input with an extra leading dim: (2, 8, 5) -> grid=(1,)
    states = jax.random.normal(xkey, (2, 8, state_dim), dtype=jnp.float32)
    q = jax.block_until_ready(dqn_forward(states, params))
    assert q.shape == (2, 8, action_dim)

    ref = _ref_forward_bf16(states, params, state_dim, action_dim)
    assert jnp.allclose(q, ref, atol=2e-3, rtol=2e-3), float(jnp.max(jnp.abs(q - ref)))
    ref32 = _ref_forward_f32(states, params, state_dim, action_dim)
    assert jnp.allclose(q, ref32, atol=5e-2, rtol=5e-2)

    # Larger case: exercises the multi-step "parallel" grid (>=2 steps on v7x).
    states_big = jax.random.normal(xkey2, (1000, state_dim), dtype=jnp.float32)
    q_big = jax.block_until_ready(dqn_forward(states_big, params))
    assert q_big.shape == (1000, action_dim)
    ref_big = _ref_forward_bf16(states_big, params, state_dim, action_dim)
    assert jnp.allclose(q_big, ref_big, atol=2e-3, rtol=2e-3), \
        float(jnp.max(jnp.abs(q_big - ref_big)))

    print("KERNEL_OK")
</pallas_src>

<mosaic_0001>
module attributes {stable_mosaic.version = 11 : i64} {
  func.func @_dqn_kernel(%arg0: i32, %arg1: memref<16x5xf32, #tpu.memory_space<vmem>>, %arg2: memref<5x64xbf16, #tpu.memory_space<vmem>>, %arg3: memref<1x64xf32, #tpu.memory_space<vmem>>, %arg4: memref<1x64x64xbf16, #tpu.memory_space<vmem>>, %arg5: memref<1x1x64xf32, #tpu.memory_space<vmem>>, %arg6: memref<64x4xbf16, #tpu.memory_space<vmem>>, %arg7: memref<1x4xf32, #tpu.memory_space<vmem>>, %arg8: memref<16x4xf32, #tpu.memory_space<vmem>>) attributes {dimension_semantics = [#tpu.dimension_semantics<parallel>], iteration_bounds = array<i64: 1>, scalar_prefetch = 0 : i64, scratch_operands = 0 : i64, tpu.core_type = #tpu.core_type<tc>, window_params = [{transform_indices = @transform_0, window_bounds = array<i64: 16, 5>}, {pipeline_mode = #tpu.pipeline_mode<synchronous>, transform_indices = @transform_1, window_bounds = array<i64: 5, 64>}, {pipeline_mode = #tpu.pipeline_mode<synchronous>, transform_indices = @transform_2, window_bounds = array<i64: 1, 64>}, {pipeline_mode = #tpu.pipeline_mode<synchronous>, transform_indices = @transform_3, window_bounds = array<i64: 1, 64, 64>}, {pipeline_mode = #tpu.pipeline_mode<synchronous>, transform_indices = @transform_4, window_bounds = array<i64: 1, 1, 64>}, {pipeline_mode = #tpu.pipeline_mode<synchronous>, transform_indices = @transform_5, window_bounds = array<i64: 64, 4>}, {pipeline_mode = #tpu.pipeline_mode<synchronous>, transform_indices = @transform_6, window_bounds = array<i64: 1, 4>}, {transform_indices = @transform_7, window_bounds = array<i64: 16, 4>}]} {
    %c0 = arith.constant 0 : index
    %c0_0 = arith.constant 0 : index
    %0 = vector.load %arg1[%c0, %c0_0] : memref<16x5xf32, #tpu.memory_space<vmem>>, vector<16x5xf32>
    %1 = arith.truncf %0 : vector<16x5xf32> to vector<16x5xbf16>
    %c0_1 = arith.constant 0 : index
    %c0_2 = arith.constant 0 : index
    %2 = vector.load %arg2[%c0_1, %c0_2] : memref<5x64xbf16, #tpu.memory_space<vmem>>, vector<5x64xbf16>
    %cst = arith.constant dense<0.000000e+00> : vector<16x64xf32>
    %3 = tpu.matmul %1, %2, %cst {dimension_numbers = #tpu.dot_dimension_numbers<[1], [0], [0], [1], [0, 0, 1, 1], [], []>} : vector<16x5xbf16>, vector<5x64xbf16>, vector<16x64xf32> -> vector<16x64xf32>
    %c0_3 = arith.constant 0 : index
    %c0_4 = arith.constant 0 : index
    %4 = vector.load %arg3[%c0_3, %c0_4] : memref<1x64xf32, #tpu.memory_space<vmem>>, vector<1x64xf32>
    %5 = vector.broadcast %4 : vector<1x64xf32> to vector<16x64xf32>
    %6 = arith.addf %3, %5 : vector<16x64xf32>
    %cst_5 = arith.constant 0.000000e+00 : f32
    %7 = vector.broadcast %cst_5 : f32 to vector<16x64xf32>
    %8 = arith.maximumf %6, %7 : vector<16x64xf32>
    %9 = arith.truncf %8 : vector<16x64xf32> to vector<16x64xbf16>
    %c0_6 = arith.constant 0 : index
    %c0_7 = arith.constant 0 : index
    %c0_8 = arith.constant 0 : index
    %10 = vector.load %arg4[%c0_6, %c0_7, %c0_8] : memref<1x64x64xbf16, #tpu.memory_space<vmem>>, vector<1x64x64xbf16>
    %11 = vector.shape_cast %10 : vector<1x64x64xbf16> to vector<64x64xbf16>
    %cst_9 = arith.constant dense<0.000000e+00> : vector<16x64xf32>
    %12 = tpu.matmul %9, %11, %cst_9 {dimension_numbers = #tpu.dot_dimension_numbers<[1], [0], [0], [1], [0, 0, 1, 1], [], []>} : vector<16x64xbf16>, vector<64x64xbf16>, vector<16x64xf32> -> vector<16x64xf32>
    %c0_10 = arith.constant 0 : index
    %c0_11 = arith.constant 0 : index
    %c0_12 = arith.constant 0 : index
    %13 = vector.load %arg5[%c0_10, %c0_11, %c0_12] : memref<1x1x64xf32, #tpu.memory_space<vmem>>, vector<1x1x64xf32>
    %14 = vector.shape_cast %13 : vector<1x1x64xf32> to vector<1x64xf32>
    %15 = vector.broadcast %14 : vector<1x64xf32> to vector<16x64xf32>
    %16 = arith.addf %12, %15 : vector<16x64xf32>
    %cst_13 = arith.constant 0.000000e+00 : f32
    %17 = vector.broadcast %cst_13 : f32 to vector<16x64xf32>
    %18 = arith.maximumf %16, %17 : vector<16x64xf32>
    %19 = arith.truncf %18 : vector<16x64xf32> to vector<16x64xbf16>
    %c0_14 = arith.constant 0 : index
    %c0_15 = arith.constant 0 : index
    %20 = vector.load %arg6[%c0_14, %c0_15] : memref<64x4xbf16, #tpu.memory_space<vmem>>, vector<64x4xbf16>
    %cst_16 = arith.constant dense<0.000000e+00> : vector<16x4xf32>
    %21 = tpu.matmul %19, %20, %cst_16 {dimension_numbers = #tpu.dot_dimension_numbers<[1], [0], [0], [1], [0, 0, 1, 1], [], []>} : vector<16x64xbf16>, vector<64x4xbf16>, vector<16x4xf32> -> vector<16x4xf32>
    %c0_17 = arith.constant 0 : index
    %c0_18 = arith.constant 0 : index
    %22 = vector.load %arg7[%c0_17, %c0_18] : memref<1x4xf32, #tpu.memory_space<vmem>>, vector<1x4xf32>
    %23 = vector.broadcast %22 : vector<1x4xf32> to vector<16x4xf32>
    %24 = arith.addf %21, %23 : vector<16x4xf32>
    %c0_19 = arith.constant 0 : index
    %c0_20 = arith.constant 0 : index
    %25 = vector.load %arg8[%c0_19, %c0_20] : memref<16x4xf32, #tpu.memory_space<vmem>>, vector<16x4xf32>
    tpu.vector_store %arg8[%c0_19, %c0_20], %24 {strides = array<i32>} : memref<16x4xf32, #tpu.memory_space<vmem>>, vector<16x4xf32>,
    return
  }
  func.func @transform_0(%arg0: i32) -> (i32, i32) {
    %c0_i32 = arith.constant 0 : i32
    %c0_i32_0 = arith.constant 0 : i32
    return %arg0, %c0_i32 : i32, i32
  }
  func.func @transform_1(%arg0: i32) -> (i32, i32) {
    %c0_i32 = arith.constant 0 : i32
    %c0_i32_0 = arith.constant 0 : i32
    %c0_i32_1 = arith.constant 0 : i32
    return %c0_i32, %c0_i32_0 : i32, i32
  }
  func.func @transform_2(%arg0: i32) -> (i32, i32) {
    %c0_i32 = arith.constant 0 : i32
    %c0_i32_0 = arith.constant 0 : i32
    %c0_i32_1 = arith.constant 0 : i32
    return %c0_i32, %c0_i32_0 : i32, i32
  }
  func.func @transform_3(%arg0: i32) -> (i32, i32, i32) {
    %c0_i32 = arith.constant 0 : i32
    %c0_i32_0 = arith.constant 0 : i32
    %c0_i32_1 = arith.constant 0 : i32
    %c0_i32_2 = arith.constant 0 : i32
    return %c0_i32, %c0_i32_0, %c0_i32_1 : i32, i32, i32
  }
  func.func @transform_4(%arg0: i32) -> (i32, i32, i32) {
    %c0_i32 = arith.constant 0 : i32
    %c0_i32_0 = arith.constant 0 : i32
    %c0_i32_1 = arith.constant 0 : i32
    %c0_i32_2 = arith.constant 0 : i32
    return %c0_i32, %c0_i32_0, %c0_i32_1 : i32, i32, i32
  }
  func.func @transform_5(%arg0: i32) -> (i32, i32) {
    %c0_i32 = arith.constant 0 : i32
    %c0_i32_0 = arith.constant 0 : i32
    %c0_i32_1 = arith.constant 0 : i32
    return %c0_i32, %c0_i32_0 : i32, i32
  }
  func.func @transform_6(%arg0: i32) -> (i32, i32) {
    %c0_i32 = arith.constant 0 : i32
    %c0_i32_0 = arith.constant 0 : i32
    %c0_i32_1 = arith.constant 0 : i32
    return %c0_i32, %c0_i32_0 : i32, i32
  }
  func.func @transform_7(%arg0: i32) -> (i32, i32) {
    %c0_i32 = arith.constant 0 : i32
    %c0_i32_0 = arith.constant 0 : i32
    return %arg0, %c0_i32 : i32, i32
  }
}

</mosaic_0001>

<llo_original>
// kernel: tpu_custom_call.1
$region0: #{tpu_custom_call.1}
  #allocation0 [shape = 'u32[]', space=smem, size = 0x4, offset = 0x4, fixed_abs, tag = 'smem constant byte address 0x4 - core index']
  #allocation1 [shape = 'u32[72,128]{1,0:T(1,128)}', space=vmem, size = 0x9000, scoped, tag = 'internal scratch']
  %s0 = inlined_call_operand.vmem [shape: f32[16,5], index: 0, kind: input, shape index: {}]
  %s1 = inlined_call_operand.vmem [shape: bf16[5,64], index: 1, kind: input, shape index: {}]
  %s2 = inlined_call_operand.vmem [shape: f32[1,64], index: 2, kind: input, shape index: {}]
  %s3 = inlined_call_operand.vmem [shape: bf16[1,64,64], index: 3, kind: input, shape index: {}]
  %s4 = inlined_call_operand.vmem [shape: f32[1,1,64], index: 4, kind: input, shape index: {}]
  %s5 = inlined_call_operand.vmem [shape: bf16[64,4], index: 5, kind: input, shape index: {}]
  %s6 = inlined_call_operand.vmem [shape: f32[1,4], index: 6, kind: input, shape index: {}]
  %s7 = inlined_call_operand.vmem [shape: f32[16,4], index: 7, kind: output, shape index: {}]
  %s8 = sld [smem:[#allocation0]]
  $region38: #{tpu_custom_call.1} parent=0
    _
  %s10 = ssub.s32 1, %s8
  %s11 = scalar_select 0, %s10, %s8
  // Predicated region
  $region2: #{tpu_custom_call.1} parent=0 // pred_check
    _
  $region3: #{tpu_custom_call.1} parent=0 // pred_check_branch
    %13 = sbr.rel (0) target = $region5
  $region4: #{tpu_custom_call.1} parent=0 // pred_region
    _
  $region5: #{tpu_custom_call.1} parent=0 // pred_fallthru
    _
  // Predicated region
  $region6: #{tpu_custom_call.1} parent=0 // pred_check
    _
  $region7: #{tpu_custom_call.1} parent=0 // pred_check_branch
    %15 = sbr.rel (0) target = $region9
  $region8: #{tpu_custom_call.1} parent=0 // pred_region
    _
  $region9: #{tpu_custom_call.1} parent=0 // pred_fallthru
    _
  // Predicated region
  $region10: #{tpu_custom_call.1} parent=0 // pred_check
    _
  $region11: #{tpu_custom_call.1} parent=0 // pred_check_branch
    %17 = sbr.rel (0) target = $region13
  $region12: #{tpu_custom_call.1} parent=0 // pred_region
    _
  $region13: #{tpu_custom_call.1} parent=0 // pred_fallthru
    _
  // Predicated region
  $region14: #{tpu_custom_call.1} parent=0 // pred_check
    _
  $region15: #{tpu_custom_call.1} parent=0 // pred_check_branch
    %19 = sbr.rel (0) target = $region17
  $region16: #{tpu_custom_call.1} parent=0 // pred_region
    _
  $region17: #{tpu_custom_call.1} parent=0 // pred_fallthru
    _
  // Predicated region
  $region18: #{tpu_custom_call.1} parent=0 // pred_check
    _
  $region19: #{tpu_custom_call.1} parent=0 // pred_check_branch
    %21 = sbr.rel (0) target = $region21
  $region20: #{tpu_custom_call.1} parent=0 // pred_region
    _
  $region21: #{tpu_custom_call.1} parent=0 // pred_fallthru
    _
  // Predicated region
  $region22: #{tpu_custom_call.1} parent=0 // pred_check
    _
  $region23: #{tpu_custom_call.1} parent=0 // pred_check_branch
    %23 = sbr.rel (0) target = $region25
  $region24: #{tpu_custom_call.1} parent=0 // pred_region
    _
  $region25: #{tpu_custom_call.1} parent=0 // pred_fallthru
    _
  // Predicated region
  $region26: #{tpu_custom_call.1} parent=0 // pred_check
    _
  $region27: #{tpu_custom_call.1} parent=0 // pred_check_branch
    %25 = sbr.rel (0) target = $region29
  $region28: #{tpu_custom_call.1} parent=0 // pred_region
    _
  $region29: #{tpu_custom_call.1} parent=0 // pred_fallthru
    _
  %v27 = vld [vmem:[%s0] sm:$0xff]
  %v28 = vld [vmem:[%s0 + $0x8] sm:$0xff]
  %v29 = vpack.c.bf16 %v28, %v27
  %v30 = vld [vmem:[%s1] sm:$0x7]
  %v31 = vld [vmem:[%s2] sm:$0x1]
  %v33 = vperm.slane %v31, 0
  %vm35 = vcmask 39936
  %v37 = vsel %vm35, %v29, 0
  %vm39 = vcmask 1041408
  %vm40 = vcmask 1042432
  %v41 = vsel %vm39, 4294967295, 65535
  %v42 = vsel %vm40, %v41, 0
  %v44 = vand.u32 %v30, %v42
  %46 = vmatpush.bf16.msra.mxu0 0
  %47 = vmatpush.bf16.msra.mxu0 0
  %48 = vmatpush.bf16.msra.mxu0 0
  %49 = vmatpush.bf16.msra.mxu0 0
  %50 = vmatpush.bf16.msra.mxu0 0
  %51 = vmatpush.bf16.msra.mxu0 0
  %52 = vmatpush.bf16.msra.mxu0 0
  %53 = vmatpush.bf16.msra.mxu0 %v44
  %54 = vmatmul.bf16.gmra.mxu0 %v37
  %v55 = vpop.f32.mrf.mxu0
  %v56 = vadd.f32 %v33, %v55
  %v57 = vpop.f32.mrf.mxu0
  %v58 = vadd.f32 %v33, %v57
  %59 = vdwg.mxu0
  %v60 = vmax.f32 %v56, 0.0
  %v61 = vmax.f32 %v58, 0.0
  %v62 = vpack.c.bf16 %v61, %v60
  %v63 = vld [vmem:[%s3] sm:$0xf]
  %v64 = vld [vmem:[%s3 + $0x4] sm:$0xf]
  %v65 = vld [vmem:[%s3 + $0x8] sm:$0xf]
  %v66 = vld [vmem:[%s3 + $0xc] sm:$0xf]
  %v67 = vld [vmem:[%s3 + $0x10] sm:$0xf]
  %v68 = vld [vmem:[%s3 + $0x14] sm:$0xf]
  %v69 = vld [vmem:[%s3 + $0x18] sm:$0xf]
  %v70 = vld [vmem:[%s3 + $0x1c] sm:$0xf]
  %v71 = vld [vmem:[%s4] sm:$0x1]
  %v73 = vperm.slane %v71, 0
  %v83 = vunpack.c.l.b16 %v63
  %v84 = vunpack.c.l.b16 %v64
  %v85 = vunpack.c.l.b16 %v65
  %v86 = vunpack.c.l.b16 %v66
  %v87 = vunpack.c.l.b16 %v67
  %v88 = vunpack.c.l.b16 %v68
  %v89 = vunpack.c.l.b16 %v69
  %v90 = vunpack.c.l.b16 %v70
  %v91 = vpack.c.b16 %v84, %v83
  %v92 = vpack.c.b16 %v86, %v85
  %v93 = vpack.c.b16 %v88, %v87
  %v94 = vpack.c.b16 %v90, %v89
  %vm99 = vcmask 523264
  %v101 = vsel %vm99, %v62, 0
  %103 = vmatpush.bf16.msra.mxu0 0
  %104 = vmatpush.bf16.msra.mxu0 0
  %105 = vmatpush.bf16.msra.mxu0 0
  %106 = vmatpush.bf16.msra.mxu0 0
  %107 = vmatpush.bf16.msra.mxu0 %v94
  %108 = vmatpush.bf16.msra.mxu0 %v93
  %109 = vmatpush.bf16.msra.mxu0 %v92
  %110 = vmatpush.bf16.msra.mxu0 %v91
  %111 = vmatmul.bf16.gmra.mxu0 %v101
  %v112 = vpop.f32.mrf.mxu0
  %v113 = vadd.f32 %v73, %v112
  %v114 = vpop.f32.mrf.mxu0
  %v115 = vadd.f32 %v73, %v114
  %116 = vdwg.mxu0
  %v117 = vmax.f32 %v113, 0.0
  %v118 = vmax.f32 %v115, 0.0
  %v119 = vpack.c.bf16 %v118, %v117
  %v120 = vld [vmem:[%s5] sm:$0xf]
  %v121 = vld [vmem:[%s5 + $0x4] sm:$0xf]
  %v122 = vld [vmem:[%s5 + $0x8] sm:$0xf]
  %v123 = vld [vmem:[%s5 + $0xc] sm:$0xf]
  %v124 = vld [vmem:[%s5 + $0x10] sm:$0xf]
  %v125 = vld [vmem:[%s5 + $0x14] sm:$0xf]
  %v126 = vld [vmem:[%s5 + $0x18] sm:$0xf]
  %v127 = vld [vmem:[%s5 + $0x1c] sm:$0xf]
  %v128 = vld [vmem:[%s6] sm:$0x1]
  %v130 = vperm.slane %v128, 0
  %v140 = vunpack.c.l.b16 %v120
  %v141 = vunpack.c.l.b16 %v121
  %v142 = vunpack.c.l.b16 %v122
  %v143 = vunpack.c.l.b16 %v123
  %v144 = vunpack.c.l.b16 %v124
  %v145 = vunpack.c.l.b16 %v125
  %v146 = vunpack.c.l.b16 %v126
  %v147 = vunpack.c.l.b16 %v127
  %v148 = vpack.c.b16 %v141, %v140
  %v149 = vpack.c.b16 %v143, %v142
  %v150 = vpack.c.b16 %v145, %v144
  %v151 = vpack.c.b16 %v147, %v146
  %v157 = vsel %vm99, %v119, 0
  %159 = vmatpush.bf16.msra.mxu0 0
  %160 = vmatpush.bf16.msra.mxu0 0
  %161 = vmatpush.bf16.msra.mxu0 0
  %162 = vmatpush.bf16.msra.mxu0 0
  %163 = vmatpush.bf16.msra.mxu0 %v151
  %164 = vmatpush.bf16.msra.mxu0 %v150
  %165 = vmatpush.bf16.msra.mxu0 %v149
  %166 = vmatpush.bf16.msra.mxu0 %v148
  %167 = vmatmul.bf16.gmra.mxu0 %v157
  %v168 = vpop.f32.mrf.mxu0
  %v169 = vadd.f32 %v130, %v168
  %v170 = vpop.f32.mrf.mxu0
  %v171 = vadd.f32 %v130, %v170
  %172 = vdwg.mxu0
  %vm173 = vcmask 31744
  %174 = vst.msk [vmem:[%s7] sm:$0xff] %vm173, %v169
  %175 = vst.msk [vmem:[%s7 + $0x8] sm:$0xff] %vm173, %v171
  // Predicated region
  $region30: #{tpu_custom_call.1} parent=0 // pred_check
    _
  $region31: #{tpu_custom_call.1} parent=0 // pred_check_branch
    %177 = sbr.rel (0) target = $region33
  $region32: #{tpu_custom_call.1} parent=0 // pred_region
    _
  $region33: #{tpu_custom_call.1} parent=0 // pred_fallthru
    _
  // Predicated region
  $region34: #{tpu_custom_call.1} parent=0 // pred_check
    _
  $region35: #{tpu_custom_call.1} parent=0 // pred_check_branch
    %179 = sbr.rel (0) target = $region37
  $region36: #{tpu_custom_call.1} parent=0 // pred_region
    _
  $region37: #{tpu_custom_call.1} parent=0 // pred_fallthru
    _

</llo_original>
